<compile_context>
chip_gen: v6e
topology: v6e:2x2x1
jax: 0.10.0
libtpu: 0.0.40
codegen_flags: <defaults>
</compile_context>

<pallas_src>
import inspect

import jax
import jax.numpy as jnp
from jax.experimental import pallas as pl
from jax.experimental.pallas import tpu as pltpu

_LANE = 128
_SUBLANE = 8


def _round_up(n, m):
    return ((n + m - 1) // m) * m


def _cdiv(a, b):
    return -(-a // b)


def _pipeline_mode_supported():
    try:
        return hasattr(pl, "Buffered") and (
            "pipeline_mode" in inspect.signature(pl.BlockSpec).parameters)
    except (TypeError, ValueError):
        return False


def _vmem_capacity_bytes():
    # Hardware query only; conservative fallback = v7x per-TensorCore VMEM (64 MiB).
    try:
        return int(pltpu.get_tpu_info().vmem_capacity_bytes)
    except Exception:
        return 64 * 1024 * 1024


def _make_kernel(mxu_dtype):
    def kernel(x_ref, w1_ref, b1_ref, w2_ref, b2_ref, w3_ref, b3_ref, o_ref):
        # Strictly row-independent (no cross-row reductions), so garbage rows in a
        # ragged final batch tile cannot contaminate valid rows, and Pallas never
        # writes the out-of-bounds output rows back.
        x = x_ref[...].astype(mxu_dtype)                      # bf16 operands for the MXU
        h1 = jnp.dot(x, w1_ref[...], preferred_element_type=jnp.float32)
        h1 = jnp.maximum(h1 + b1_ref[...], 0.0)               # f32 bias + ReLU (VPU)
        h2 = jnp.dot(h1.astype(mxu_dtype), w2_ref[...],
                     preferred_element_type=jnp.float32)
        h2 = jnp.maximum(h2 + b2_ref[...], 0.0)               # f32
        # fc3 has a single output unit: VPU multiply + lane reduction, all f32
        # (v5e's VPU has no bf16).  (tb, 1) column output = the reduction's natural
        # layout -> no per-step relayout; the store is tiny (4*tb bytes/step).
        out = jnp.sum(h2 * w3_ref[...], axis=-1, keepdims=True) + b3_ref[0, 0]
        o_ref[...] = out.astype(o_ref.dtype)
    return kernel


def mlp_forward(x, params, *, batch_tile=None, use_bf16=True, x_buffer_count=3):
    """Fused MLP forward. x: [B, input_size]; params weights stored (in, out), biases (1, out)."""
    B, D = x.shape
    if x.dtype not in (jnp.float32, jnp.bfloat16):
        x = x.astype(jnp.float32)                             # mirrors torch's x.float()

    w1, b1 = params["w1"], params["b1"]                       # (D, 2H), (1, 2H)
    w2, b2 = params["w2"], params["b2"]                       # (2H, H), (1, H)
    w3, b3 = params["w3"], params["b3"]                       # (H, 1),  (1, 1)
    H2, H = w1.shape[1], w2.shape[1]

    mxu_dtype = jnp.bfloat16 if use_bf16 else jnp.float32
    mxu_bytes = jnp.dtype(mxu_dtype).itemsize

    # ---- feature-dim padding (zero pad is exact for linear + ReLU) ----
    H2_p = _round_up(H2, _LANE)
    H_p = _round_up(H, _LANE)

    if D % _LANE == 0:
        # Lane aligned: stream x straight from HBM (no wrapper pad/cast copy);
        # the kernel casts the tile to bf16 in VMEM.
        x_in, D_in = x, D
    else:
        # Unaligned: a padded copy is unavoidable — write it at MXU precision so the
        # copy and every subsequent x DMA are half width.
        D_in = _round_up(D, _LANE)
        x_in = jnp.pad(x.astype(jnp.float32).astype(mxu_dtype),
                       ((0, 0), (0, D_in - D)))
    x_bytes = jnp.dtype(x_in.dtype).itemsize

    w1_p = jnp.pad(w1.astype(jnp.float32),
                   ((0, D_in - D), (0, H2_p - H2))).astype(mxu_dtype)       # (D_in, H2_p)
    b1_p = jnp.pad(b1.astype(jnp.float32).reshape(1, H2), ((0, 0), (0, H2_p - H2)))
    w2_p = jnp.pad(w2.astype(jnp.float32),
                   ((0, H2_p - H2), (0, H_p - H))).astype(mxu_dtype)        # (H2_p, H_p)
    b2_p = jnp.pad(b2.astype(jnp.float32).reshape(1, H), ((0, 0), (0, H_p - H)))
    w3_p = jnp.pad(w3.astype(jnp.float32).reshape(1, H), ((0, 0), (0, H_p - H)))  # f32 (VPU)
    b3_p = b3.astype(jnp.float32).reshape(1, 1)                                    # SMEM scalar

    weight_vmem = (w1_p.size * mxu_bytes + w2_p.size * mxu_bytes
                   + (_SUBLANE * H2_p + 2 * _SUBLANE * H_p) * 4)   # biases/w3 pad to (8, lanes)

    # ---- generation-aware VMEM budget & batch tile ----
    vmem_cap = _vmem_capacity_bytes()              # 128 MiB on v5e/v6e, 64 MiB per TC on v7x
    vmem_budget = max(32 * 1024 * 1024, vmem_cap - 16 * 1024 * 1024)
    n_xbuf = max(2, int(x_buffer_count))

    def _vmem_est(t):
        return (n_xbuf * t * D_in * x_bytes        # pipelined x tiles
                + 2 * t * 4                        # double-buffered (t, 1) output
                + t * H2_p * (4 + mxu_bytes)       # h1 (f32 + bf16 copy for 2nd matmul)
                + t * H_p * 4                      # h2 (f32)
                + 2 * weight_vmem)                 # resident weights (double-buffered)

    if batch_tile is None:
        tb = 2048 if vmem_budget >= 96 * 1024 * 1024 else 1024
    else:
        tb = int(batch_tile)
    tb = max(_SUBLANE, _round_up(min(tb, _round_up(B, _SUBLANE)), _SUBLANE))
    while tb > _SUBLANE and _vmem_est(tb) > vmem_budget:
        tb = max(_SUBLANE, _round_up(tb // 2, _SUBLANE))

    # v7x has two TensorCores fed by the "parallel" batch axis: make sure a
    # non-trivial batch produces at least two grid steps (harmless on 1-TC parts).
    if _cdiv(B, tb) == 1 and B >= 2 * _LANE:
        tb = max(_SUBLANE, _round_up(_cdiv(B, 2), _SUBLANE))

    grid = _cdiv(B, tb)

    # Hard limit handed to Mosaic stays below physical capacity (esp. v7x's 64 MiB).
    vmem_limit = int(min(vmem_cap - 8 * 1024 * 1024,
                         max(32 * 1024 * 1024, 2 * _vmem_est(tb))))

    flops = 2 * B * (D_in * H2_p + H2_p * H_p) + 3 * B * H_p
    bytes_accessed = (B * D_in * x_bytes
                      + (w1_p.size + w2_p.size) * mxu_bytes
                      + (b1_p.size + b2_p.size + w3_p.size + b3_p.size) * 4
                      + B * 4)
    cost = pl.CostEstimate(flops=int(flops), transcendentals=0,
                           bytes_accessed=int(bytes_accessed))

    kernel = _make_kernel(mxu_dtype)
    out_shape = jax.ShapeDtypeStruct((B, 1), jnp.float32)

    def resident(arr):
        # Constant index_map -> block resident in VMEM across the whole grid.
        return pl.BlockSpec(arr.shape, lambda i, nd=arr.ndim: (0,) * nd)

    def build_call(x_pipeline_mode):
        x_kwargs = {}
        if x_pipeline_mode is not None:
            x_kwargs["pipeline_mode"] = x_pipeline_mode
        in_specs = [
            pl.BlockSpec((tb, D_in), lambda i: (i, 0), **x_kwargs),   # streamed x tile
            resident(w1_p), resident(b1_p),
            resident(w2_p), resident(b2_p),
            resident(w3_p),
            pl.BlockSpec(memory_space=pltpu.MemorySpace.SMEM),        # b3 scalar
        ]
        return pl.pallas_call(
            kernel,
            out_shape=out_shape,
            grid_spec=pltpu.PrefetchScalarGridSpec(
                num_scalar_prefetch=0,
                grid=(grid,),
                in_specs=in_specs,
                out_specs=pl.BlockSpec((tb, 1), lambda i: (i, 0)),
            ),
            compiler_params=pltpu.CompilerParams(
                dimension_semantics=("parallel",),
                vmem_limit_bytes=vmem_limit,
            ),
            cost_estimate=cost,
        )

    args = (x_in, w1_p, b1_p, w2_p, b2_p, w3_p, b3_p)

    if _pipeline_mode_supported() and n_xbuf != 2:
        try:
            return build_call(pl.Buffered(n_xbuf))(*args)
        except Exception:
            # Narrow fallback: the ONLY delta on retry is dropping pipeline_mode
            # (which uses strictly LESS VMEM), so genuine compile/VMEM errors will
            # re-raise from the retry below rather than being masked.
            pass
    return build_call(None)(*args)


def init_params(key, input_size, hidden_size):
    """torch.nn.Linear init U(-1/sqrt(fan_in), +1/sqrt(fan_in)); weights stored (in, out)."""
    def linear(k, fan_in, fan_out):
        kw, kb = jax.random.split(k)
        bound = 1.0 / (fan_in ** 0.5)
        w = jax.random.uniform(kw, (fan_in, fan_out), jnp.float32, -bound, bound)
        b = jax.random.uniform(kb, (1, fan_out), jnp.float32, -bound, bound)
        return w, b

    k1, k2, k3 = jax.random.split(key, 3)
    w1, b1 = linear(k1, input_size, hidden_size * 2)
    w2, b2 = linear(k2, hidden_size * 2, hidden_size)
    w3, b3 = linear(k3, hidden_size, 1)
    return {"w1": w1, "b1": b1, "w2": w2, "b2": b2, "w3": w3, "b3": b3}


def mlp_reference(x, params, mxu_dtype=jnp.float32):
    """Pure-JAX reference. mxu_dtype=bfloat16 mirrors the kernel's MXU operand cast."""
    xf = x.astype(jnp.float32)
    h1 = jnp.dot(xf.astype(mxu_dtype), params["w1"].astype(mxu_dtype),
                 preferred_element_type=jnp.float32) + params["b1"]
    h1 = jnp.maximum(h1, 0.0)
    h2 = jnp.dot(h1.astype(mxu_dtype), params["w2"].astype(mxu_dtype),
                 preferred_element_type=jnp.float32) + params["b2"]
    h2 = jnp.maximum(h2, 0.0)
    return h2 @ params["w3"] + params["b3"]


if __name__ == "__main__":
    key = jax.random.PRNGKey(0)
    kx, kp, kx2, kp2 = jax.random.split(key, 4)

    batch, input_size, hidden_size = 8, 32, 32
    x = jax.random.normal(kx, (batch, input_size), dtype=jnp.float32)
    params = init_params(kp, input_size, hidden_size)

    # 1) default bf16-MXU path (unaligned D -> half-width padded x copy).
    out = jax.block_until_ready(mlp_forward(x, params))
    assert out.shape == (batch, 1), out.shape
    ref_bf = mlp_reference(x, params, mxu_dtype=jnp.bfloat16)
    ref_f32 = mlp_reference(x, params)
    assert jnp.allclose(out, ref_bf, atol=1e-2, rtol=1e-2), "mismatch vs bf16-matched ref"
    assert jnp.allclose(out, ref_f32, atol=5e-2, rtol=5e-2), "mismatch vs f32 ref"

    # 2) exact-precision path (f32 operands), mirrors torch's fp32 forward.
    out_f32 = jax.block_until_ready(mlp_forward(x, params, use_bf16=False))
    assert out_f32.shape == (batch, 1), out_f32.shape
    assert jnp.allclose(out_f32, ref_f32, atol=1e-4, rtol=1e-4), "mismatch (f32 path)"

    # 3) lane-aligned D (x streamed with no wrapper copy) + ragged multi-step grid.
    batch2, input2 = 300, 128
    x2 = jax.random.normal(kx2, (batch2, input2), dtype=jnp.float32)
    params2 = init_params(kp2, input2, hidden_size)
    out2 = jax.block_until_ready(mlp_forward(x2, params2))
    assert out2.shape == (batch2, 1), out2.shape
    ref2 = mlp_reference(x2, params2, mxu_dtype=jnp.bfloat16)
    assert jnp.allclose(out2, ref2, atol=1e-2, rtol=1e-2), "mismatch (ragged grid)"

    print("KERNEL_OK")
</pallas_src>

<mosaic_0001>
module attributes {stable_mosaic.version = 11 : i64} {
  func.func @kernel(%arg0: i32, %arg1: memref<8x128xbf16, #tpu.memory_space<vmem>>, %arg2: memref<128x128xbf16, #tpu.memory_space<vmem>>, %arg3: memref<1x128xf32, #tpu.memory_space<vmem>>, %arg4: memref<128x128xbf16, #tpu.memory_space<vmem>>, %arg5: memref<1x128xf32, #tpu.memory_space<vmem>>, %arg6: memref<1x128xf32, #tpu.memory_space<vmem>>, %arg7: memref<1x1xf32, #tpu.memory_space<smem>>, %arg8: memref<8x1xf32, #tpu.memory_space<vmem>>) attributes {dimension_semantics = [#tpu.dimension_semantics<parallel>], iteration_bounds = array<i64: 1>, scalar_prefetch = 0 : i64, scratch_operands = 0 : i64, tpu.core_type = #tpu.core_type<tc>, window_params = [{transform_indices = @transform_0, window_bounds = array<i64: 8, 128>}, {pipeline_mode = #tpu.pipeline_mode<synchronous>, transform_indices = @transform_1, window_bounds = array<i64: 128, 128>}, {pipeline_mode = #tpu.pipeline_mode<synchronous>, transform_indices = @transform_2, window_bounds = array<i64: 1, 128>}, {pipeline_mode = #tpu.pipeline_mode<synchronous>, transform_indices = @transform_3, window_bounds = array<i64: 128, 128>}, {pipeline_mode = #tpu.pipeline_mode<synchronous>, transform_indices = @transform_4, window_bounds = array<i64: 1, 128>}, {pipeline_mode = #tpu.pipeline_mode<synchronous>, transform_indices = @transform_5, window_bounds = array<i64: 1, 128>}, {transform_indices = @transform_6, window_bounds = array<i64: 1, 1>}, {transform_indices = @transform_7, window_bounds = array<i64: 8, 1>}]} {
    %c0 = arith.constant 0 : index
    %c0_0 = arith.constant 0 : index
    %0 = vector.load %arg1[%c0, %c0_0] : memref<8x128xbf16, #tpu.memory_space<vmem>>, vector<8x128xbf16>
    %c0_1 = arith.constant 0 : index
    %c0_2 = arith.constant 0 : index
    %1 = vector.load %arg2[%c0_1, %c0_2] : memref<128x128xbf16, #tpu.memory_space<vmem>>, vector<128x128xbf16>
    %cst = arith.constant dense<0.000000e+00> : vector<8x128xf32>
    %2 = tpu.matmul %0, %1, %cst {dimension_numbers = #tpu.dot_dimension_numbers<[1], [0], [0], [1], [0, 0, 1, 1], [], []>} : vector<8x128xbf16>, vector<128x128xbf16>, vector<8x128xf32> -> vector<8x128xf32>
    %c0_3 = arith.constant 0 : index
    %c0_4 = arith.constant 0 : index
    %3 = vector.load %arg3[%c0_3, %c0_4] : memref<1x128xf32, #tpu.memory_space<vmem>>, vector<1x128xf32>
    %4 = vector.broadcast %3 : vector<1x128xf32> to vector<8x128xf32>
    %5 = arith.addf %2, %4 : vector<8x128xf32>
    %cst_5 = arith.constant 0.000000e+00 : f32
    %6 = vector.broadcast %cst_5 : f32 to vector<8x128xf32>
    %7 = arith.maximumf %5, %6 : vector<8x128xf32>
    %8 = arith.truncf %7 : vector<8x128xf32> to vector<8x128xbf16>
    %c0_6 = arith.constant 0 : index
    %c0_7 = arith.constant 0 : index
    %9 = vector.load %arg4[%c0_6, %c0_7] : memref<128x128xbf16, #tpu.memory_space<vmem>>, vector<128x128xbf16>
    %cst_8 = arith.constant dense<0.000000e+00> : vector<8x128xf32>
    %10 = tpu.matmul %8, %9, %cst_8 {dimension_numbers = #tpu.dot_dimension_numbers<[1], [0], [0], [1], [0, 0, 1, 1], [], []>} : vector<8x128xbf16>, vector<128x128xbf16>, vector<8x128xf32> -> vector<8x128xf32>
    %c0_9 = arith.constant 0 : index
    %c0_10 = arith.constant 0 : index
    %11 = vector.load %arg5[%c0_9, %c0_10] : memref<1x128xf32, #tpu.memory_space<vmem>>, vector<1x128xf32>
    %12 = vector.broadcast %11 : vector<1x128xf32> to vector<8x128xf32>
    %13 = arith.addf %10, %12 : vector<8x128xf32>
    %cst_11 = arith.constant 0.000000e+00 : f32
    %14 = vector.broadcast %cst_11 : f32 to vector<8x128xf32>
    %15 = arith.maximumf %13, %14 : vector<8x128xf32>
    %c0_12 = arith.constant 0 : index
    %c0_13 = arith.constant 0 : index
    %16 = vector.load %arg6[%c0_12, %c0_13] : memref<1x128xf32, #tpu.memory_space<vmem>>, vector<1x128xf32>
    %17 = vector.broadcast %16 : vector<1x128xf32> to vector<8x128xf32>
    %18 = arith.mulf %15, %17 : vector<8x128xf32>
    %cst_14 = arith.constant dense<0.000000e+00> : vector<8xf32>
    %19 = vector.multi_reduction <add>, %18, %cst_14 [1] : vector<8x128xf32> to vector<8xf32>
    %20 = vector.shape_cast %19 : vector<8xf32> to vector<8x1xf32>
    %c0_15 = arith.constant 0 : index
    %c0_16 = arith.constant 0 : index
    %21 = memref.load %arg7[%c0_15, %c0_16] : memref<1x1xf32, #tpu.memory_space<smem>>
    %22 = vector.broadcast %21 : f32 to vector<8x1xf32>
    %23 = arith.addf %20, %22 : vector<8x1xf32>
    %c0_17 = arith.constant 0 : index
    %c0_18 = arith.constant 0 : index
    %24 = vector.load %arg8[%c0_17, %c0_18] : memref<8x1xf32, #tpu.memory_space<vmem>>, vector<8x1xf32>
    tpu.vector_store %arg8[%c0_17, %c0_18], %23 {strides = array<i32>} : memref<8x1xf32, #tpu.memory_space<vmem>>, vector<8x1xf32>,
    return
  }
  func.func @transform_0(%arg0: i32) -> (i32, i32) {
    %c0_i32 = arith.constant 0 : i32
    %c0_i32_0 = arith.constant 0 : i32
    return %arg0, %c0_i32 : i32, i32
  }
  func.func @transform_1(%arg0: i32) -> (i32, i32) {
    %c0_i32 = arith.constant 0 : i32
    %c0_i32_0 = arith.constant 0 : i32
    %c0_i32_1 = arith.constant 0 : i32
    return %c0_i32, %c0_i32_0 : i32, i32
  }
  func.func @transform_2(%arg0: i32) -> (i32, i32) {
    %c0_i32 = arith.constant 0 : i32
    %c0_i32_0 = arith.constant 0 : i32
    %c0_i32_1 = arith.constant 0 : i32
    return %c0_i32, %c0_i32_0 : i32, i32
  }
  func.func @transform_3(%arg0: i32) -> (i32, i32) {
    %c0_i32 = arith.constant 0 : i32
    %c0_i32_0 = arith.constant 0 : i32
    %c0_i32_1 = arith.constant 0 : i32
    return %c0_i32, %c0_i32_0 : i32, i32
  }
  func.func @transform_4(%arg0: i32) -> (i32, i32) {
    %c0_i32 = arith.constant 0 : i32
    %c0_i32_0 = arith.constant 0 : i32
    %c0_i32_1 = arith.constant 0 : i32
    return %c0_i32, %c0_i32_0 : i32, i32
  }
  func.func @transform_5(%arg0: i32) -> (i32, i32) {
    %c0_i32 = arith.constant 0 : i32
    %c0_i32_0 = arith.constant 0 : i32
    %c0_i32_1 = arith.constant 0 : i32
    return %c0_i32, %c0_i32_0 : i32, i32
  }
  func.func @transform_6(%arg0: i32) -> (i32, i32) {
    %c0_i32 = arith.constant 0 : i32
    %c0_i32_0 = arith.constant 0 : i32
    %c0_i32_1 = arith.constant 0 : i32
    return %c0_i32, %c0_i32_0 : i32, i32
  }
  func.func @transform_7(%arg0: i32) -> (i32, i32) {
    %c0_i32 = arith.constant 0 : i32
    %c0_i32_0 = arith.constant 0 : i32
    return %arg0, %c0_i32 : i32, i32
  }
}

</mosaic_0001>

<llo_original>
// kernel: tpu_custom_call.1
$region0: #{tpu_custom_call.1}
  #allocation0 [shape = 'u32[]', space=smem, size = 0x4, offset = 0x4, fixed_abs, tag = 'smem constant byte address 0x4 - core index']
  #allocation1 [shape = 'u32[144,128]{1,0:T(1,128)}', space=vmem, size = 0x12000, scoped, tag = 'internal scratch']
  #allocation2 [shape = 'f32[1,1]{1,0:T(1,128)S(6)}', space=smem, size = 0x200, scoped, tag = 'scoped memory for tpu_custom_call.1']
  %s0 = inlined_call_operand.hbm [shape: bf16[8,128], index: 0, kind: input, shape index: {}]
  %s1 = inlined_call_operand.hbm [shape: bf16[128,128], index: 1, kind: input, shape index: {}]
  %s2 = inlined_call_operand.vmem [shape: f32[1,128], index: 2, kind: input, shape index: {}]
  %s3 = inlined_call_operand.hbm [shape: bf16[128,128], index: 3, kind: input, shape index: {}]
  %s4 = inlined_call_operand.vmem [shape: f32[1,128], index: 4, kind: input, shape index: {}]
  %s5 = inlined_call_operand.vmem [shape: f32[1,128], index: 5, kind: input, shape index: {}]
  %s6 = inlined_call_operand.<no memory space> [shape: f32[1,1], index: 6, kind: input, shape index: {}]
  %s7 = inlined_call_operand.vmem [shape: f32[8,1], index: 7, kind: output, shape index: {}]
  %s8 = sld [smem:[#allocation0]]
  $region50: #{tpu_custom_call.1} parent=0
    _
  %s10 = ssub.s32 1, %s8
  %s11 = scalar_select 0, %s10, %s8
  %12 = sst [smem:[#allocation2]] %s6
  $region1: #{tpu_custom_call.1} parent=0
    #allocation3 [shape = 'u8[2048]{0}', space=vmem, size = 0x800, scoped, tag = 'input window, operand 0, single buffered']
    #allocation4 [shape = 's32[1]{0}', space=sflag, size = 0x4, scoped, tag = 'scoped memory for tpu_custom_call.1']
    #allocation5 [shape = 'u8[32768]{0}', space=vmem, size = 0x8000, scoped, tag = 'input window, operand 1, single buffered']
    #allocation6 [shape = 's32[1]{0}', space=sflag, size = 0x4, scoped, tag = 'scoped memory for tpu_custom_call.1']
    #allocation7 [shape = 'u8[32768]{0}', space=vmem, size = 0x8000, scoped, tag = 'input window, operand 3, single buffered']
    %13 = vsyncpa [#allocation4], 0
    %14 = vsyncpa [#allocation6], 0
    // Predicated region
    $region2: #{tpu_custom_call.1} parent=1 // pred_check
      _
    $region3: #{tpu_custom_call.1} parent=1 // pred_check_branch
      %16 = sbr.rel (0) target = $region5
    $region4: #{tpu_custom_call.1} parent=1 // pred_region
      %s18 = ssub.s32 64, 64
      %19 = vsyncadd [#allocation4], %s18
      %s21 = sshll.u32 [#allocation3], 4
      %s22 = int_to_ptr.vmem [resolvable:$true] %s21
      %24 = dma.hbm_to_vmem [thread:$0]  %s0, 64, %s22, [#allocation4]
    $region5: #{tpu_custom_call.1} parent=1 // pred_fallthru
      _
    // Predicated region
    $region6: #{tpu_custom_call.1} parent=1 // pred_check
      _
    $region7: #{tpu_custom_call.1} parent=1 // pred_check_branch
      %26 = sbr.rel (0) target = $region9
    $region8: #{tpu_custom_call.1} parent=1 // pred_region
      %s28 = ssub.s32 1024, 1024
      %29 = vsyncadd [#allocation6], %s28
      %s30 = sshll.u32 [#allocation5], 4
      %s31 = int_to_ptr.vmem [resolvable:$true] %s30
      %36 = dma.hbm_to_vmem [thread:$0]  %s1, 1024, %s31, [#allocation6], 64, 64, 4
    $region9: #{tpu_custom_call.1} parent=1 // pred_fallthru
      _
    // Predicated region
    $region10: #{tpu_custom_call.1} parent=1 // pred_check
      _
    $region11: #{tpu_custom_call.1} parent=1 // pred_check_branch
      %38 = sbr.rel (0) target = $region13
    $region12: #{tpu_custom_call.1} parent=1 // pred_region
      _
    $region13: #{tpu_custom_call.1} parent=1 // pred_fallthru
      _
    // Predicated region
    $region14: #{tpu_custom_call.1} parent=1 // pred_check
      _
    $region15: #{tpu_custom_call.1} parent=1 // pred_check_branch
      %40 = sbr.rel (0) target = $region17
    $region16: #{tpu_custom_call.1} parent=1 // pred_region
      %s42 = ssub.s32 1024, 1024
      %43 = vsyncadd [#allocation6], %s42
      %s44 = sshll.u32 [#allocation7], 4
      %s45 = int_to_ptr.vmem [resolvable:$true] %s44
      %50 = dma.hbm_to_vmem [thread:$0]  %s3, 1024, %s45, [#allocation6], 64, 64, 4
    $region17: #{tpu_custom_call.1} parent=1 // pred_fallthru
      _
    // Predicated region
    $region18: #{tpu_custom_call.1} parent=1 // pred_check
      _
    $region19: #{tpu_custom_call.1} parent=1 // pred_check_branch
      %52 = sbr.rel (0) target = $region21
    $region20: #{tpu_custom_call.1} parent=1 // pred_region
      _
    $region21: #{tpu_custom_call.1} parent=1 // pred_fallthru
      _
    // Predicated region
    $region22: #{tpu_custom_call.1} parent=1 // pred_check
      _
    $region23: #{tpu_custom_call.1} parent=1 // pred_check_branch
      %54 = sbr.rel (0) target = $region25
    $region24: #{tpu_custom_call.1} parent=1 // pred_region
      _
    $region25: #{tpu_custom_call.1} parent=1 // pred_fallthru
      _
    // Predicated region
    $region26: #{tpu_custom_call.1} parent=1 // pred_check
      _
    $region27: #{tpu_custom_call.1} parent=1 // pred_check_branch
      %56 = sbr.rel (0) target = $region29
    $region28: #{tpu_custom_call.1} parent=1 // pred_region
      _
    $region29: #{tpu_custom_call.1} parent=1 // pred_fallthru
      _
    // Predicated region
    $region30: #{tpu_custom_call.1} parent=1 // pred_check
      _
    $region31: #{tpu_custom_call.1} parent=1 // pred_check_branch
      %58 = sbr.rel (0) target = $region33
    $region32: #{tpu_custom_call.1} parent=1 // pred_region
      %59 = dma.done [#allocation4], 64
    $region33: #{tpu_custom_call.1} parent=1 // pred_fallthru
      _
    // Predicated region
    $region34: #{tpu_custom_call.1} parent=1 // pred_check
      _
    $region35: #{tpu_custom_call.1} parent=1 // pred_check_branch
      %61 = sbr.rel (0) target = $region37
    $region36: #{tpu_custom_call.1} parent=1 // pred_region
      %62 = dma.done [#allocation6], 1024
    $region37: #{tpu_custom_call.1} parent=1 // pred_fallthru
      _
    // Predicated region
    $region38: #{tpu_custom_call.1} parent=1 // pred_check
      _
    $region39: #{tpu_custom_call.1} parent=1 // pred_check_branch
      %64 = sbr.rel (0) target = $region41
    $region40: #{tpu_custom_call.1} parent=1 // pred_region
      %65 = dma.done [#allocation6], 1024
    $region41: #{tpu_custom_call.1} parent=1 // pred_fallthru
      _
    %v67 = vld [vmem:[#allocation3] sm:$0xf]
    %v68 = vld [vmem:[#allocation5] sm:$0xf]
    %v69 = vld [vmem:[#allocation5 + $0x4] sm:$0xf]
    %v70 = vld [vmem:[#allocation5 + $0x8] sm:$0xf]
    %v71 = vld [vmem:[#allocation5 + $0xc] sm:$0xf]
    %v72 = vld [vmem:[#allocation5 + $0x10] sm:$0xf]
    %v73 = vld [vmem:[#allocation5 + $0x14] sm:$0xf]
    %v74 = vld [vmem:[#allocation5 + $0x18] sm:$0xf]
    %v75 = vld [vmem:[#allocation5 + $0x1c] sm:$0xf]
    %v76 = vld [vmem:[#allocation5 + $0x20] sm:$0xf]
    %v77 = vld [vmem:[#allocation5 + $0x24] sm:$0xf]
    %v78 = vld [vmem:[#allocation5 + $0x28] sm:$0xf]
    %v79 = vld [vmem:[#allocation5 + $0x2c] sm:$0xf]
    %v80 = vld [vmem:[#allocation5 + $0x30] sm:$0xf]
    %v81 = vld [vmem:[#allocation5 + $0x34] sm:$0xf]
    %v82 = vld [vmem:[#allocation5 + $0x38] sm:$0xf]
    %v83 = vld [vmem:[#allocation5 + $0x3c] sm:$0xf]
    %v84 = vld [vmem:[%s2] sm:$0x1]
    %v86 = vlaneseq
    %v87 = vshrl.u32 %v86, 7
    %v88 = vsub.s32 0, %v87
    %v89 = vrot.slane %v84, %v88
    %v107 = vunpack.c.l.b16 %v68
    %v108 = vunpack.c.l.b16 %v69
    %v109 = vunpack.c.l.b16 %v70
    %v110 = vunpack.c.l.b16 %v71
    %v111 = vunpack.c.l.b16 %v72
    %v112 = vunpack.c.l.b16 %v73
    %v113 = vunpack.c.l.b16 %v74
    %v114 = vunpack.c.l.b16 %v75
    %v115 = vunpack.c.l.b16 %v76
    %v116 = vunpack.c.l.b16 %v77
    %v117 = vunpack.c.l.b16 %v78
    %v118 = vunpack.c.l.b16 %v79
    %v119 = vunpack.c.l.b16 %v80
    %v120 = vunpack.c.l.b16 %v81
    %v121 = vunpack.c.l.b16 %v82
    %v122 = vunpack.c.l.b16 %v83
    %v123 = vpack.c.b16 %v108, %v107
    %v124 = vpack.c.b16 %v110, %v109
    %v125 = vpack.c.b16 %v112, %v111
    %v126 = vpack.c.b16 %v114, %v113
    %v127 = vpack.c.b16 %v116, %v115
    %v128 = vpack.c.b16 %v118, %v117
    %v129 = vpack.c.b16 %v120, %v119
    %v130 = vpack.c.b16 %v122, %v121
    %139 = vmatprep.subr.bf16.mxu0 0
    %140 = vmatpush1.bf16.msra.mxu0 %v130
    %141 = vmatprep.subr.bf16.mxu0 0
    %142 = vmatpush1.bf16.msra.mxu0 %v129
    %143 = vmatprep.subr.bf16.mxu0 0
    %144 = vmatpush1.bf16.msra.mxu0 %v128
    %145 = vmatprep.subr.bf16.mxu0 0
    %146 = vmatpush1.bf16.msra.mxu0 %v127
    %147 = vmatprep.subr.bf16.mxu0 0
    %148 = vmatpush1.bf16.msra.mxu0 %v126
    %149 = vmatprep.subr.bf16.mxu0 0
    %150 = vmatpush1.bf16.msra.mxu0 %v125
    %151 = vmatprep.subr.bf16.mxu0 0
    %152 = vmatpush1.bf16.msra.mxu0 %v124
    %153 = vmatprep.subr.bf16.mxu0 0
    %154 = vmatpush1.bf16.msra.mxu0 %v123
    %155 = vmatprep.subr.bf16.mxu0 0
    %156 = vmatpush2.bf16.msra.mxu0 0
    %157 = vmatprep.subr.bf16.mxu0 0
    %158 = vmatpush2.bf16.msra.mxu0 0
    %159 = vmatprep.subr.bf16.mxu0 0
    %160 = vmatpush2.bf16.msra.mxu0 0
    %161 = vmatprep.subr.bf16.mxu0 0
    %162 = vmatpush2.bf16.msra.mxu0 0
    %163 = vmatprep.subr.bf16.mxu0 0
    %164 = vmatpush2.bf16.msra.mxu0 0
    %165 = vmatprep.subr.bf16.mxu0 0
    %166 = vmatpush2.bf16.msra.mxu0 0
    %167 = vmatprep.subr.bf16.mxu0 0
    %168 = vmatpush2.bf16.msra.mxu0 0
    %169 = vmatprep.subr.bf16.mxu0 0
    %170 = vmatpush2.bf16.msra.mxu0 0
    %171 = vmatprep.mubr.bf16.mxu0 0
    %172 = vmatmul.mubr.bf16.gmra.mxu0 %v67
    %v173 = vpop.f32.mrf.mxu0
    %v174 = vadd.f32 %v89, %v173
    %v175 = vpop.f32.mrf.mxu0
    %v176 = vpop.f32.mrf.mxu0
    %v177 = vpop.f32.mrf.mxu0
    %178 = vdwg.mxu0
    %v179 = vmax.f32 %v174, 0.0
    %v180 = vpack.c.bf16 %v179, %v179
    %v181 = vld [vmem:[#allocation7] sm:$0xf]
    %v182 = vld [vmem:[#allocation7 + $0x4] sm:$0xf]
    %v183 = vld [vmem:[#allocation7 + $0x8] sm:$0xf]
    %v184 = vld [vmem:[#allocation7 + $0xc] sm:$0xf]
    %v185 = vld [vmem:[#allocation7 + $0x10] sm:$0xf]
    %v186 = vld [vmem:[#allocation7 + $0x14] sm:$0xf]
    %v187 = vld [vmem:[#allocation7 + $0x18] sm:$0xf]
    %v188 = vld [vmem:[#allocation7 + $0x1c] sm:$0xf]
    %v189 = vld [vmem:[#allocation7 + $0x20] sm:$0xf]
    %v190 = vld [vmem:[#allocation7 + $0x24] sm:$0xf]
    %v191 = vld [vmem:[#allocation7 + $0x28] sm:$0xf]
    %v192 = vld [vmem:[#allocation7 + $0x2c] sm:$0xf]
    %v193 = vld [vmem:[#allocation7 + $0x30] sm:$0xf]
    %v194 = vld [vmem:[#allocation7 + $0x34] sm:$0xf]
    %v195 = vld [vmem:[#allocation7 + $0x38] sm:$0xf]
    %v196 = vld [vmem:[#allocation7 + $0x3c] sm:$0xf]
    %v197 = vld [vmem:[%s4] sm:$0x1]
    %v199 = vlaneseq
    %v200 = vshrl.u32 %v199, 7
    %v201 = vsub.s32 0, %v200
    %v202 = vrot.slane %v197, %v201
    %v220 = vunpack.c.l.b16 %v181
    %v221 = vunpack.c.l.b16 %v182
    %v222 = vunpack.c.l.b16 %v183
    %v223 = vunpack.c.l.b16 %v184
    %v224 = vunpack.c.l.b16 %v185
    %v225 = vunpack.c.l.b16 %v186
    %v226 = vunpack.c.l.b16 %v187
    %v227 = vunpack.c.l.b16 %v188
    %v228 = vunpack.c.l.b16 %v189
    %v229 = vunpack.c.l.b16 %v190
    %v230 = vunpack.c.l.b16 %v191
    %v231 = vunpack.c.l.b16 %v192
    %v232 = vunpack.c.l.b16 %v193
    %v233 = vunpack.c.l.b16 %v194
    %v234 = vunpack.c.l.b16 %v195
    %v235 = vunpack.c.l.b16 %v196
    %v236 = vpack.c.b16 %v221, %v220
    %v237 = vpack.c.b16 %v223, %v222
    %v238 = vpack.c.b16 %v225, %v224
    %v239 = vpack.c.b16 %v227, %v226
    %v240 = vpack.c.b16 %v229, %v228
    %v241 = vpack.c.b16 %v231, %v230
    %v242 = vpack.c.b16 %v233, %v232
    %v243 = vpack.c.b16 %v235, %v234
    %252 = vmatprep.subr.bf16.mxu0 0
    %253 = vmatpush1.bf16.msra.mxu0 %v243
    %254 = vmatprep.subr.bf16.mxu0 0
    %255 = vmatpush1.bf16.msra.mxu0 %v242
    %256 = vmatprep.subr.bf16.mxu0 0
    %257 = vmatpush1.bf16.msra.mxu0 %v241
    %258 = vmatprep.subr.bf16.mxu0 0
    %259 = vmatpush1.bf16.msra.mxu0 %v240
    %260 = vmatprep.subr.bf16.mxu0 0
    %261 = vmatpush1.bf16.msra.mxu0 %v239
    %262 = vmatprep.subr.bf16.mxu0 0
    %263 = vmatpush1.bf16.msra.mxu0 %v238
    %264 = vmatprep.subr.bf16.mxu0 0
    %265 = vmatpush1.bf16.msra.mxu0 %v237
    %266 = vmatprep.subr.bf16.mxu0 0
    %267 = vmatpush1.bf16.msra.mxu0 %v236
    %268 = vmatprep.subr.bf16.mxu0 0
    %269 = vmatpush2.bf16.msra.mxu0 0
    %270 = vmatprep.subr.bf16.mxu0 0
    %271 = vmatpush2.bf16.msra.mxu0 0
    %272 = vmatprep.subr.bf16.mxu0 0
    %273 = vmatpush2.bf16.msra.mxu0 0
    %274 = vmatprep.subr.bf16.mxu0 0
    %275 = vmatpush2.bf16.msra.mxu0 0
    %276 = vmatprep.subr.bf16.mxu0 0
    %277 = vmatpush2.bf16.msra.mxu0 0
    %278 = vmatprep.subr.bf16.mxu0 0
    %279 = vmatpush2.bf16.msra.mxu0 0
    %280 = vmatprep.subr.bf16.mxu0 0
    %281 = vmatpush2.bf16.msra.mxu0 0
    %282 = vmatprep.subr.bf16.mxu0 0
    %283 = vmatpush2.bf16.msra.mxu0 0
    %284 = vmatprep.mubr.bf16.mxu0 0
    %285 = vmatmul.mubr.bf16.gmra.mxu0 %v180
    %v286 = vpop.f32.mrf.mxu0
    %v287 = vadd.f32 %v202, %v286
    %v288 = vpop.f32.mrf.mxu0
    %v289 = vpop.f32.mrf.mxu0
    %v290 = vpop.f32.mrf.mxu0
    %291 = vdwg.mxu0
    %v292 = vmax.f32 %v287, 0.0
    %v293 = vld [vmem:[%s5] sm:$0x1]
    %v295 = vlaneseq
    %v296 = vshrl.u32 %v295, 7
    %v297 = vsub.s32 0, %v296
    %v298 = vrot.slane %v293, %v297
    %v300 = vmul.f32 %v292, %v298
    %301 = vadd.xlane.f32.xlu0 %v300
    %v302 = vpop.xlane.xlu0 %301
    %s303 = sld [smem:[#allocation2]]
    %v304 = vstv %s303
    %v305 = vadd.f32 %v302, %v304
    %vm306 = vcmask 7168
    %307 = vst.msk [vmem:[%s7] sm:$0xff] %vm306, %v305
    // Predicated region
    $region42: #{tpu_custom_call.1} parent=1 // pred_check
      _
    $region43: #{tpu_custom_call.1} parent=1 // pred_check_branch
      %309 = sbr.rel (0) target = $region45
    $region44: #{tpu_custom_call.1} parent=1 // pred_region
      _
    $region45: #{tpu_custom_call.1} parent=1 // pred_fallthru
      _
    // Predicated region
    $region46: #{tpu_custom_call.1} parent=1 // pred_check
      _
    $region47: #{tpu_custom_call.1} parent=1 // pred_check_branch
      %311 = sbr.rel (0) target = $region49
    $region48: #{tpu_custom_call.1} parent=1 // pred_region
      _
    $region49: #{tpu_custom_call.1} parent=1 // pred_fallthru
      _
    %312 = vsyncpa [#allocation4], 1
    %313 = vsyncpa [#allocation6], 1

</llo_original>
